<compile_context>
chip_gen: v7x
topology: tpu7x:2x2x1
jax: 0.10.0
libtpu: 0.0.40
codegen_flags: <defaults>
</compile_context>

<pallas_src>
import jax
import jax.numpy as jnp
from jax.experimental import pallas as pl
from jax.experimental.pallas import tpu as pltpu

_CLAMP_MIN = -0.9
_CLAMP_MAX = 1.0

_LANE = 512                             # lane-dense last dim (multiple of 128)
_TARGET_BLOCK_BYTES = 2 * 1024 * 1024   # ~2 MiB/block -> 4x (in+out, dbl-buffered) = 8 MiB VMEM
_MIN_PALLAS_ELEMS = 1 << 18             # below ~1 MiB of f32, pallas_call is pure overhead


def _clamp_kernel(x_ref, o_ref):
    # Elementwise clamp on the current VMEM tile (VPU min/max; kernel is HBM-bound).
    o_ref[...] = jnp.minimum(jnp.maximum(x_ref[...], _CLAMP_MIN), _CLAMP_MAX)


def _sublane_pack(itemsize):
    # Rows per packed sublane group: 8 for 4-byte, 16 for 2-byte, 32 for 1-byte dtypes.
    return {4: 8, 2: 16, 1: 32}.get(itemsize, 8)


def clamp_pallas(x):
    """torch.clamp(x, -0.9, 1.0) via a row-tiled, pipelined Pallas TPU kernel."""
    orig_shape = x.shape
    dtype = x.dtype
    n = x.size
    itemsize = jnp.dtype(dtype).itemsize
    sublane = _sublane_pack(itemsize)

    # Lane-dense 2D slab: (rows, _LANE), rows a multiple of the sublane packing.
    min_rows = pl.cdiv(n, _LANE)
    min_rows = pl.cdiv(min_rows, sublane) * sublane

    # Block rows sized for ~_TARGET_BLOCK_BYTES, multiple of the sublane packing.
    block_rows = max(sublane, _TARGET_BLOCK_BYTES // (_LANE * itemsize))
    block_rows -= block_rows % sublane
    block_rows = min(block_rows, min_rows)

    # Pad rows so the grid divides evenly (extra padding < one block, sliced off later).
    rows = pl.cdiv(min_rows, block_rows) * block_rows
    padded_n = rows * _LANE

    flat = x.reshape(-1)
    if padded_n != n:
        flat = jnp.pad(flat, (0, padded_n - n))
    x2d = flat.reshape(rows, _LANE)

    out = pl.pallas_call(
        _clamp_kernel,
        out_shape=jax.ShapeDtypeStruct((rows, _LANE), dtype),
        grid=(rows // block_rows,),
        in_specs=[pl.BlockSpec((block_rows, _LANE), lambda i: (i, 0))],
        out_specs=pl.BlockSpec((block_rows, _LANE), lambda i: (i, 0)),
        # The padded/reshaped input is a dead temporary -> reuse its HBM buffer.
        input_output_aliases={0: 0},
        compiler_params=pltpu.CompilerParams(
            # Row axis is embarrassingly parallel: sharded across both TCs on v7x,
            # harmless no-op on v5e/v6e.
            dimension_semantics=("parallel",),
        ),
    )(x2d)

    return out.reshape(-1)[:n].reshape(orig_shape)


def clamp(x):
    """Module forward: tiny tensors go to fused XLA clip (launch overhead dominates
    below ~1 MiB); everything else uses the Pallas path."""
    if x.size < _MIN_PALLAS_ELEMS:
        return jnp.clip(x, _CLAMP_MIN, _CLAMP_MAX)
    return clamp_pallas(x)


if __name__ == "__main__":
    key = jax.random.PRNGKey(0)
    k1, k2 = jax.random.split(key)

    # Small NCHW input consistent with the pixel-MLP module.
    x_small = jax.random.normal(k1, (2, 4, 16, 16), dtype=jnp.float32) * 2.0
    ref_small = jnp.clip(x_small, _CLAMP_MIN, _CLAMP_MAX)

    # Exercise the Pallas kernel directly on the small input (single padded block).
    y_small = clamp_pallas(x_small)
    jax.block_until_ready(y_small)
    assert y_small.shape == x_small.shape and y_small.dtype == x_small.dtype
    assert jnp.allclose(y_small, ref_small), "small-input mismatch vs reference"

    # Dispatcher path (falls back to jnp.clip for this tiny size).
    y_disp = clamp(x_small)
    assert jnp.allclose(y_disp, ref_small), "dispatcher mismatch vs reference"

    # Larger, ragged input (~8.9 MB f32) exercising the multi-block pipelined grid
    # plus the pad-and-slice path.
    x_big = jax.random.normal(k2, (3, 5, 384, 385), dtype=jnp.float32) * 2.0
    y_big = clamp_pallas(x_big)
    jax.block_until_ready(y_big)
    assert y_big.shape == x_big.shape and y_big.dtype == x_big.dtype
    assert jnp.allclose(y_big, jnp.clip(x_big, _CLAMP_MIN, _CLAMP_MAX)), \
        "large-input mismatch vs reference"

    print("KERNEL_OK")
</pallas_src>

<mosaic_0001>
module attributes {stable_mosaic.version = 11 : i64} {
  func.func @_clamp_kernel(%arg0: i32, %arg1: memref<8x512xf32, #tpu.memory_space<vmem>>, %arg2: memref<8x512xf32, #tpu.memory_space<vmem>>) attributes {dimension_semantics = [#tpu.dimension_semantics<parallel>], iteration_bounds = array<i64: 1>, scalar_prefetch = 0 : i64, scratch_operands = 0 : i64, tpu.core_type = #tpu.core_type<tc>, window_params = [{transform_indices = @transform_0, window_bounds = array<i64: 8, 512>}, {transform_indices = @transform_1, window_bounds = array<i64: 8, 512>}]} {
    %c0 = arith.constant 0 : index
    %c0_0 = arith.constant 0 : index
    %0 = vector.load %arg1[%c0, %c0_0] : memref<8x512xf32, #tpu.memory_space<vmem>>, vector<8x512xf32>
    %cst = arith.constant -0.899999976 : f32
    %1 = vector.broadcast %cst : f32 to vector<8x512xf32>
    %2 = arith.maximumf %0, %1 : vector<8x512xf32>
    %cst_1 = arith.constant 1.000000e+00 : f32
    %3 = vector.broadcast %cst_1 : f32 to vector<8x512xf32>
    %4 = arith.minimumf %2, %3 : vector<8x512xf32>
    %c0_2 = arith.constant 0 : index
    %c0_3 = arith.constant 0 : index
    %5 = vector.load %arg2[%c0_2, %c0_3] : memref<8x512xf32, #tpu.memory_space<vmem>>, vector<8x512xf32>
    tpu.vector_store %arg2[%c0_2, %c0_3], %4 {strides = array<i32>} : memref<8x512xf32, #tpu.memory_space<vmem>>, vector<8x512xf32>,
    return
  }
  func.func @transform_0(%arg0: i32) -> (i32, i32) {
    %c0_i32 = arith.constant 0 : i32
    %c0_i32_0 = arith.constant 0 : i32
    return %arg0, %c0_i32 : i32, i32
  }
  func.func @transform_1(%arg0: i32) -> (i32, i32) {
    %c0_i32 = arith.constant 0 : i32
    %c0_i32_0 = arith.constant 0 : i32
    return %arg0, %c0_i32 : i32, i32
  }
}

</mosaic_0001>

<llo_original>
// kernel: tpu_custom_call.1
$region0: #{tpu_custom_call.1}
  #allocation0 [shape = 'u32[]', space=smem, size = 0x4, offset = 0x4, fixed_abs, tag = 'smem constant byte address 0x4 - core index']
  #allocation1 [shape = 'u32[144,128]{1,0:T(1,128)}', space=vmem, size = 0x12000, scoped, tag = 'internal scratch']
  %s0 = inlined_call_operand.hbm [shape: f32[8,512], index: 0, kind: input, shape index: {}, may-alias: {0,1}]
  %s1 = inlined_call_operand.hbm [shape: f32[8,512], index: 1, kind: output, shape index: {}, may-alias: {0,1}]
  %s2 = sld [smem:[#allocation0]]
  $region18: #{tpu_custom_call.1} parent=0
    _
  %s4 = ssub.s32 1, %s2
  %s5 = scalar_select 0, %s4, %s2
  $region1: #{tpu_custom_call.1} parent=0
    #allocation2 [shape = 'u8[16384]{0}', space=vmem, size = 0x4000, scoped, tag = 'input window, operand 0, single buffered']
    #allocation3 [shape = 's32[1]{0}', space=sflag, size = 0x4, scoped, tag = 'scoped memory for tpu_custom_call.1']
    #allocation4 [shape = 's32[1]{0}', space=sflag, size = 0x4, scoped, tag = 'scoped memory for tpu_custom_call.1']
    #allocation5 [shape = 'u8[16384]{0}', space=vmem, size = 0x4000, scoped, tag = 'output window, operand 0, single buffered']
    %6 = vsyncpa [#allocation3], 0
    %7 = vsyncpa [#allocation4], 0
    // Predicated region
    $region2: #{tpu_custom_call.1} parent=1 // pred_check
      _
    $region3: #{tpu_custom_call.1} parent=1 // pred_check_branch
      %9 = sbr.rel (0) target = $region5
    $region4: #{tpu_custom_call.1} parent=1 // pred_region
      %s11 = ssub.s32 512, 512
      %12 = vsyncadd [#allocation3], %s11
      %s14 = sshll.u32 [#allocation2], 4
      %s15 = int_to_ptr.vmem [resolvable:$true] %s14
      %17 = dma.hbm_to_vmem [thread:$0]  %s0, 512, %s15, [#allocation3]
    $region5: #{tpu_custom_call.1} parent=1 // pred_fallthru
      _
    // Predicated region
    $region6: #{tpu_custom_call.1} parent=1 // pred_check
      _
    $region7: #{tpu_custom_call.1} parent=1 // pred_check_branch
      %19 = sbr.rel (0) target = $region9
    $region8: #{tpu_custom_call.1} parent=1 // pred_region
      %20 = dma.done [#allocation3], 512
    $region9: #{tpu_custom_call.1} parent=1 // pred_fallthru
      _
    %v21 = vld [vmem:[#allocation2] sm:$0xff]
    %v22 = vld [vmem:[#allocation2 + $0x8] sm:$0xff]
    %v23 = vld [vmem:[#allocation2 + $0x10] sm:$0xff]
    %v24 = vld [vmem:[#allocation2 + $0x18] sm:$0xff]
    %v25 = vmax.f32 %v21, -0.9
    %v26 = vmax.f32 %v22, -0.9
    %v27 = vmax.f32 %v23, -0.9
    %v28 = vmax.f32 %v24, -0.9
    %v29 = vmin.f32 %v25, 1.0
    %v30 = vmin.f32 %v26, 1.0
    %v31 = vmin.f32 %v27, 1.0
    %v32 = vmin.f32 %v28, 1.0
    %33 = vst [vmem:[#allocation5] sm:$0xff] %v29
    %34 = vst [vmem:[#allocation5 + $0x8] sm:$0xff] %v30
    %35 = vst [vmem:[#allocation5 + $0x10] sm:$0xff] %v31
    %36 = vst [vmem:[#allocation5 + $0x18] sm:$0xff] %v32
    // Predicated region
    $region10: #{tpu_custom_call.1} parent=1 // pred_check
      _
    $region11: #{tpu_custom_call.1} parent=1 // pred_check_branch
      %38 = sbr.rel (0) target = $region13
    $region12: #{tpu_custom_call.1} parent=1 // pred_region
      %s40 = ssub.s32 512, 512
      %41 = vsyncadd [#allocation4], %s40
      %s43 = sshll.u32 [#allocation5], 4
      %s44 = int_to_ptr.vmem [resolvable:$true] %s43
      %46 = dma.vmem_to_hbm [thread:$0]  %s44, 512, %s1, [#allocation4]
    $region13: #{tpu_custom_call.1} parent=1 // pred_fallthru
      _
    // Predicated region
    $region14: #{tpu_custom_call.1} parent=1 // pred_check
      _
    $region15: #{tpu_custom_call.1} parent=1 // pred_check_branch
      %48 = sbr.rel (0) target = $region17
    $region16: #{tpu_custom_call.1} parent=1 // pred_region
      %49 = dma.done [#allocation4], 512
    $region17: #{tpu_custom_call.1} parent=1 // pred_fallthru
      _
    %50 = vsyncpa [#allocation3], 1
    %51 = vsyncpa [#allocation4], 1

</llo_original>
